<compile_context>
chip_gen: v5e
topology: v5e:2x2
jax: 0.10.0
libtpu: 0.0.40
codegen_flags: <defaults>
</compile_context>

<pallas_src>
import math

import jax
import jax.numpy as jnp
from jax.experimental import pallas as pl
from jax.experimental.pallas import tpu as pltpu

# Folded constants: 0.5*x*(1 + tanh(c*(x + 0.044715*x^3))) == x * sigmoid(_K1*x + _K3*x^3)
_C = math.sqrt(2.0 / math.pi)
_K1 = 2.0 * _C
_K3 = 2.0 * _C * 0.044715


def _ceil_to(n, m):
    return -(-n // m) * m


def _gelu_kernel(x_ref, o_ref):
    # f32 compute regardless of I/O dtype (required on v5e for bf16 inputs, harmless
    # elsewhere); explicit downcast on the store.
    # TODO(synk): for bf16 I/O on v6e/v7x, compute natively in bf16 if profiling ever
    # shows vld/VALU pressure approaching the HBM roofline (today it is HBM-bound).
    x = x_ref[...].astype(jnp.float32)
    z = x * (jnp.float32(_K1) + jnp.float32(_K3) * (x * x))
    # sigmoid lowers to the EUP (separate bundle slot); the VPU does the rest.
    o_ref[...] = (x * jax.nn.sigmoid(z)).astype(o_ref.dtype)


def _gelu_jax(x):
    xf = x.astype(jnp.float32)
    return (xf * jax.nn.sigmoid(xf * (_K1 + _K3 * xf * xf))).astype(x.dtype)


def gelu(x, *, max_block_bytes=2 << 20, force_pallas=False):
    """Tanh-approximation GELU (PyTorch module semantics) as a row-tiled Pallas kernel.

    max_block_bytes: per-block input footprint. 2 MiB is safe for v5e's scoped-VMEM
    default; ~4 MiB is fine (and slightly faster on huge tensors) on v6e/v7x.
    """
    orig_shape = x.shape
    d = orig_shape[-1]
    rows = 1
    for s in orig_shape[:-1]:
        rows *= s
    itemsize = jnp.dtype(x.dtype).itemsize

    # Small-input fast path: fixed pallas_call / grid-step overhead dominates; XLA's
    # fused elementwise op is strictly cheaper and avoids any launch cost.
    if not force_pallas and rows * d * itemsize <= (64 << 10):
        return _gelu_jax(x)

    x2d = x.reshape(rows, d)

    # Dtype-aware sublane pack: 8 rows (f32), 16 (bf16), 32 (int8/fp8).
    pack = 8 * max(1, 4 // itemsize)

    # Largest pack-multiple row tile fitting the per-block byte budget.
    rows_budget = max(pack, (max_block_bytes // (d * itemsize)) // pack * pack)

    if rows <= pack:
        # Single block equal to the full array shape (always a legal block shape).
        tile_rows = rows
    elif rows <= rows_budget:
        # Whole tensor fits in one block: split into two tiles so both v7x
        # TensorCores get a tile under dimension_semantics=("parallel",).
        tile_rows = _ceil_to((rows + 1) // 2, pack)
    else:
        # Large input: prefer a divisor-friendly tile (no partial last block) in the
        # upper half of the byte budget; otherwise take the full budget and accept a
        # single masked partial final block. Never pad/copy the tensor itself.
        rows_up = _ceil_to(rows, pack)
        tile_rows = rows_budget
        lo = max(pack, (rows_budget // 2) // pack * pack)
        for cand in range(rows_budget, lo - 1, -pack):
            if rows_up % cand == 0:
                tile_rows = cand
                break

    grid = (pl.cdiv(rows, tile_rows),)

    out = pl.pallas_call(
        _gelu_kernel,
        out_shape=jax.ShapeDtypeStruct((rows, d), x.dtype),
        grid_spec=pl.GridSpec(
            grid=grid,
            in_specs=[pl.BlockSpec((tile_rows, d), lambda i: (i, 0))],
            out_specs=pl.BlockSpec((tile_rows, d), lambda i: (i, 0)),
        ),
        compiler_params=pltpu.CompilerParams(
            dimension_semantics=("parallel",),  # shard row tiles across TCs (v7x)
        ),
    )(x2d)

    return out.reshape(orig_shape)


if __name__ == "__main__":
    key = jax.random.PRNGKey(0)
    k1, k2 = jax.random.split(key)

    def ref(x):
        xf = x.astype(jnp.float32)
        y = 0.5 * xf * (1.0 + jnp.tanh(jnp.sqrt(2.0 / jnp.pi) * (xf + 0.044715 * xf ** 3)))
        return y.astype(x.dtype)

    # Module's reference shape: x = torch.rand(2, 3, 768). Force the Pallas path so
    # the kernel itself is exercised (the default wrapper would take the XLA fast path).
    x = jax.random.uniform(k1, (2, 3, 768), dtype=jnp.float32)
    y = gelu(x, force_pallas=True)
    jax.block_until_ready(y)
    assert y.shape == x.shape and y.dtype == x.dtype
    assert jnp.allclose(y, ref(x), atol=1e-5, rtol=1e-5)

    # A slightly larger activation slab exercising the multi-block (two-tile) path.
    x_big = jax.random.uniform(k2, (4, 128, 768), dtype=jnp.float32)
    y_big = gelu(x_big)
    jax.block_until_ready(y_big)
    assert y_big.shape == x_big.shape and y_big.dtype == x_big.dtype
    assert jnp.allclose(y_big, ref(x_big), atol=1e-5, rtol=1e-5)

    print("KERNEL_OK")
</pallas_src>

<mosaic_0001>
module attributes {stable_mosaic.version = 11 : i64} {
  func.func @_gelu_kernel(%arg0: i32, %arg1: memref<6x768xf32, #tpu.memory_space<vmem>>, %arg2: memref<6x768xf32, #tpu.memory_space<vmem>>) attributes {dimension_semantics = [#tpu.dimension_semantics<parallel>], iteration_bounds = array<i64: 1>, scalar_prefetch = 0 : i64, scratch_operands = 0 : i64, tpu.core_type = #tpu.core_type<tc>, window_params = [{transform_indices = @transform_0, window_bounds = array<i64: 6, 768>}, {transform_indices = @transform_1, window_bounds = array<i64: 6, 768>}]} {
    %c0 = arith.constant 0 : index
    %c0_0 = arith.constant 0 : index
    %0 = vector.load %arg1[%c0, %c0_0] : memref<6x768xf32, #tpu.memory_space<vmem>>, vector<6x768xf32>
    %1 = arith.mulf %0, %0 : vector<6x768xf32>
    %cst = arith.constant 0.0713548139 : f32
    %2 = vector.broadcast %cst : f32 to vector<6x768xf32>
    %3 = arith.mulf %2, %1 : vector<6x768xf32>
    %cst_1 = arith.constant 1.59576917 : f32
    %4 = vector.broadcast %cst_1 : f32 to vector<6x768xf32>
    %5 = arith.addf %4, %3 : vector<6x768xf32>
    %6 = arith.mulf %0, %5 : vector<6x768xf32>
    %7 = arith.negf %6 : vector<6x768xf32>
    %8 = math.exp %7 : vector<6x768xf32>
    %cst_2 = arith.constant 1.000000e+00 : f32
    %9 = vector.broadcast %cst_2 : f32 to vector<6x768xf32>
    %10 = arith.addf %9, %8 : vector<6x768xf32>
    %11 = arith.divf %9, %10 : vector<6x768xf32>
    %12 = arith.mulf %0, %11 : vector<6x768xf32>
    %c0_3 = arith.constant 0 : index
    %c0_4 = arith.constant 0 : index
    %13 = vector.load %arg2[%c0_3, %c0_4] : memref<6x768xf32, #tpu.memory_space<vmem>>, vector<6x768xf32>
    tpu.vector_store %arg2[%c0_3, %c0_4], %12 {strides = array<i32>} : memref<6x768xf32, #tpu.memory_space<vmem>>, vector<6x768xf32>,
    return
  }
  func.func @transform_0(%arg0: i32) -> (i32, i32) {
    %c0_i32 = arith.constant 0 : i32
    %c0_i32_0 = arith.constant 0 : i32
    return %arg0, %c0_i32 : i32, i32
  }
  func.func @transform_1(%arg0: i32) -> (i32, i32) {
    %c0_i32 = arith.constant 0 : i32
    %c0_i32_0 = arith.constant 0 : i32
    return %arg0, %c0_i32 : i32, i32
  }
}

</mosaic_0001>

<llo_original>
// kernel: tpu_custom_call.1
$region0: #{tpu_custom_call.1}
  #allocation0 [shape = 'u32[]', space=smem, size = 0x4, offset = 0x4, fixed_abs, tag = 'smem constant byte address 0x4 - core index']
  #allocation1 [shape = 'u32[72,128]{1,0:T(1,128)}', space=vmem, size = 0x9000, scoped, tag = 'internal scratch']
  %s0 = inlined_call_operand.hbm [shape: f32[6,768], index: 0, kind: input, shape index: {}]
  %s1 = inlined_call_operand.hbm [shape: f32[6,768], index: 1, kind: output, shape index: {}]
  %s2 = sld [smem:[#allocation0]]
  $region18: #{tpu_custom_call.1} parent=0
    _
  %s4 = ssub.s32 1, %s2
  %s5 = scalar_select 0, %s4, %s2
  $region1: #{tpu_custom_call.1} parent=0
    #allocation2 [shape = 'u8[24576]{0}', space=vmem, size = 0x6000, scoped, tag = 'input window, operand 0, single buffered']
    #allocation3 [shape = 's32[1]{0}', space=sflag, size = 0x4, scoped, tag = 'scoped memory for tpu_custom_call.1']
    #allocation4 [shape = 's32[1]{0}', space=sflag, size = 0x4, scoped, tag = 'scoped memory for tpu_custom_call.1']
    #allocation5 [shape = 'u8[24576]{0}', space=vmem, size = 0x6000, scoped, tag = 'output window, operand 0, single buffered']
    %6 = vsyncpa [#allocation3], 0
    %7 = vsyncpa [#allocation4], 0
    // Predicated region
    $region2: #{tpu_custom_call.1} parent=1 // pred_check
      _
    $region3: #{tpu_custom_call.1} parent=1 // pred_check_branch
      %9 = sbr.rel (0) target = $region5
    $region4: #{tpu_custom_call.1} parent=1 // pred_region
      %11 = vsyncadd [#allocation3], 0
      %s13 = sshll.u32 %s0, 4
      %s14 = int_to_ptr.hbm [resolvable:$true] %s13
      %s15 = sshll.u32 [#allocation2], 4
      %s16 = int_to_ptr.vmem [resolvable:$true] %s15
      %18 = dma.hbm_to_vmem [thread:$0]  %s14, 768, %s16, [#allocation3]
    $region5: #{tpu_custom_call.1} parent=1 // pred_fallthru
      _
    // Predicated region
    $region6: #{tpu_custom_call.1} parent=1 // pred_check
      _
    $region7: #{tpu_custom_call.1} parent=1 // pred_check_branch
      %20 = sbr.rel (0) target = $region9
    $region8: #{tpu_custom_call.1} parent=1 // pred_region
      %22 = dma.done [#allocation3], 768
    $region9: #{tpu_custom_call.1} parent=1 // pred_fallthru
      _
    %v23 = vld [vmem:[#allocation2] sm:$0x3f]
    %v24 = vld [vmem:[#allocation2 + $0x8] sm:$0x3f]
    %v25 = vld [vmem:[#allocation2 + $0x10] sm:$0x3f]
    %v26 = vld [vmem:[#allocation2 + $0x18] sm:$0x3f]
    %v27 = vld [vmem:[#allocation2 + $0x20] sm:$0x3f]
    %v28 = vld [vmem:[#allocation2 + $0x28] sm:$0x3f]
    %v29 = vmul.f32 %v23, %v23
    %v30 = vmul.f32 %v24, %v24
    %v31 = vmul.f32 %v25, %v25
    %v32 = vmul.f32 %v26, %v26
    %v33 = vmul.f32 %v27, %v27
    %v34 = vmul.f32 %v28, %v28
    %v35 = vmul.f32 %v29, 0.071354814
    %v36 = vmul.f32 %v30, 0.071354814
    %v37 = vmul.f32 %v31, 0.071354814
    %v38 = vmul.f32 %v32, 0.071354814
    %v39 = vmul.f32 %v33, 0.071354814
    %v40 = vmul.f32 %v34, 0.071354814
    %v41 = vadd.f32 %v35, 1.5957692
    %v42 = vadd.f32 %v36, 1.5957692
    %v43 = vadd.f32 %v37, 1.5957692
    %v44 = vadd.f32 %v38, 1.5957692
    %v45 = vadd.f32 %v39, 1.5957692
    %v46 = vadd.f32 %v40, 1.5957692
    %v47 = vmul.f32 %v23, %v41
    %v48 = vmul.f32 %v24, %v42
    %v49 = vmul.f32 %v25, %v43
    %v50 = vmul.f32 %v26, %v44
    %v51 = vmul.f32 %v27, %v45
    %v52 = vmul.f32 %v28, %v46
    %v53 = vxor.u32 %v47, 2147483648
    %v54 = vxor.u32 %v48, 2147483648
    %v55 = vxor.u32 %v49, 2147483648
    %v56 = vxor.u32 %v50, 2147483648
    %v57 = vxor.u32 %v51, 2147483648
    %v58 = vxor.u32 %v52, 2147483648
    %v59 = vmul.f32 %v53, 1.442695
    %v60 = vpow.pop %v59
    %v61 = vmul.f32 %v54, 1.442695
    %v62 = vpow.pop %v61
    %v63 = vmul.f32 %v55, 1.442695
    %v64 = vpow.pop %v63
    %v65 = vmul.f32 %v56, 1.442695
    %v66 = vpow.pop %v65
    %v67 = vmul.f32 %v57, 1.442695
    %v68 = vpow.pop %v67
    %v69 = vmul.f32 %v58, 1.442695
    %v70 = vpow.pop %v69
    %v71 = vadd.f32 %v60, 1.0
    %v72 = vadd.f32 %v62, 1.0
    %v73 = vadd.f32 %v64, 1.0
    %v74 = vadd.f32 %v66, 1.0
    %v75 = vadd.f32 %v68, 1.0
    %v76 = vadd.f32 %v70, 1.0
    %v77 = vrcp.pop %v71
    %v78 = vmul.f32 %v71, %v77
    %v79 = vsub.f32 1.0, %v78
    %v80 = vmul.f32 %v77, %v79
    %v81 = vadd.f32 %v77, %v80
    %vm82 = vweird.f32 %v71
    %vm83 = vweird.f32 %v77
    %vm84 = vmor %vm82, %vm83
    %v85 = vsel %vm84, %v77, %v81
    %v86 = vand.u32 2147483647, %v71
    %vm87 = vcmp.eq.f32.partialorder %v86, 8.507059e+37
    %v88 = vand.u32 %v71, 2147483648
    %v89 = vor.u32 1.1754944e-38, %v88
    %v90 = vsel %vm87, %v89, %v85
    %v91 = vmul.f32 1.0, %v90
    %v92 = vrcp.pop %v72
    %v93 = vmul.f32 %v72, %v92
    %v94 = vsub.f32 1.0, %v93
    %v95 = vmul.f32 %v92, %v94
    %v96 = vadd.f32 %v92, %v95
    %vm97 = vweird.f32 %v72
    %vm98 = vweird.f32 %v92
    %vm99 = vmor %vm97, %vm98
    %v100 = vsel %vm99, %v92, %v96
    %v101 = vand.u32 2147483647, %v72
    %vm102 = vcmp.eq.f32.partialorder %v101, 8.507059e+37
    %v103 = vand.u32 %v72, 2147483648
    %v104 = vor.u32 1.1754944e-38, %v103
    %v105 = vsel %vm102, %v104, %v100
    %v106 = vmul.f32 1.0, %v105
    %v107 = vrcp.pop %v73
    %v108 = vmul.f32 %v73, %v107
    %v109 = vsub.f32 1.0, %v108
    %v110 = vmul.f32 %v107, %v109
    %v111 = vadd.f32 %v107, %v110
    %vm112 = vweird.f32 %v73
    %vm113 = vweird.f32 %v107
    %vm114 = vmor %vm112, %vm113
    %v115 = vsel %vm114, %v107, %v111
    %v116 = vand.u32 2147483647, %v73
    %vm117 = vcmp.eq.f32.partialorder %v116, 8.507059e+37
    %v118 = vand.u32 %v73, 2147483648
    %v119 = vor.u32 1.1754944e-38, %v118
    %v120 = vsel %vm117, %v119, %v115
    %v121 = vmul.f32 1.0, %v120
    %v122 = vrcp.pop %v74
    %v123 = vmul.f32 %v74, %v122
    %v124 = vsub.f32 1.0, %v123
    %v125 = vmul.f32 %v122, %v124
    %v126 = vadd.f32 %v122, %v125
    %vm127 = vweird.f32 %v74
    %vm128 = vweird.f32 %v122
    %vm129 = vmor %vm127, %vm128
    %v130 = vsel %vm129, %v122, %v126
    %v131 = vand.u32 2147483647, %v74
    %vm132 = vcmp.eq.f32.partialorder %v131, 8.507059e+37
    %v133 = vand.u32 %v74, 2147483648
    %v134 = vor.u32 1.1754944e-38, %v133
    %v135 = vsel %vm132, %v134, %v130
    %v136 = vmul.f32 1.0, %v135
    %v137 = vrcp.pop %v75
    %v138 = vmul.f32 %v75, %v137
    %v139 = vsub.f32 1.0, %v138
    %v140 = vmul.f32 %v137, %v139
    %v141 = vadd.f32 %v137, %v140
    %vm142 = vweird.f32 %v75
    %vm143 = vweird.f32 %v137
    %vm144 = vmor %vm142, %vm143
    %v145 = vsel %vm144, %v137, %v141
    %v146 = vand.u32 2147483647, %v75
    %vm147 = vcmp.eq.f32.partialorder %v146, 8.507059e+37
    %v148 = vand.u32 %v75, 2147483648
    %v149 = vor.u32 1.1754944e-38, %v148
    %v150 = vsel %vm147, %v149, %v145
    %v151 = vmul.f32 1.0, %v150
    %v152 = vrcp.pop %v76
    %v153 = vmul.f32 %v76, %v152
    %v154 = vsub.f32 1.0, %v153
    %v155 = vmul.f32 %v152, %v154
    %v156 = vadd.f32 %v152, %v155
    %vm157 = vweird.f32 %v76
    %vm158 = vweird.f32 %v152
    %vm159 = vmor %vm157, %vm158
    %v160 = vsel %vm159, %v152, %v156
    %v161 = vand.u32 2147483647, %v76
    %vm162 = vcmp.eq.f32.partialorder %v161, 8.507059e+37
    %v163 = vand.u32 %v76, 2147483648
    %v164 = vor.u32 1.1754944e-38, %v163
    %v165 = vsel %vm162, %v164, %v160
    %v166 = vmul.f32 1.0, %v165
    %v167 = vmul.f32 %v23, %v91
    %v168 = vmul.f32 %v24, %v106
    %v169 = vmul.f32 %v25, %v121
    %v170 = vmul.f32 %v26, %v136
    %v171 = vmul.f32 %v27, %v151
    %v172 = vmul.f32 %v28, %v166
    %173 = vst [vmem:[#allocation5] sm:$0x3f] %v167
    %174 = vst [vmem:[#allocation5 + $0x8] sm:$0x3f] %v168
    %175 = vst [vmem:[#allocation5 + $0x10] sm:$0x3f] %v169
    %176 = vst [vmem:[#allocation5 + $0x18] sm:$0x3f] %v170
    %177 = vst [vmem:[#allocation5 + $0x20] sm:$0x3f] %v171
    %178 = vst [vmem:[#allocation5 + $0x28] sm:$0x3f] %v172
    // Predicated region
    $region10: #{tpu_custom_call.1} parent=1 // pred_check
      _
    $region11: #{tpu_custom_call.1} parent=1 // pred_check_branch
      %180 = sbr.rel (0) target = $region13
    $region12: #{tpu_custom_call.1} parent=1 // pred_region
      %182 = vsyncadd [#allocation4], 0
      %s184 = sshll.u32 [#allocation5], 4
      %s185 = int_to_ptr.vmem [resolvable:$true] %s184
      %s186 = sshll.u32 %s1, 4
      %s187 = int_to_ptr.hbm [resolvable:$true] %s186
      %189 = dma.vmem_to_hbm [thread:$0]  %s185, 768, %s187, [#allocation4]
    $region13: #{tpu_custom_call.1} parent=1 // pred_fallthru
      _
    // Predicated region
    $region14: #{tpu_custom_call.1} parent=1 // pred_check
      _
    $region15: #{tpu_custom_call.1} parent=1 // pred_check_branch
      %191 = sbr.rel (0) target = $region17
    $region16: #{tpu_custom_call.1} parent=1 // pred_region
      %193 = dma.done [#allocation4], 768
    $region17: #{tpu_custom_call.1} parent=1 // pred_fallthru
      _
    %194 = vsyncpa [#allocation3], 1
    %195 = vsyncpa [#allocation4], 1

</llo_original>
